<compile_context>
chip_gen: v7x
topology: tpu7x:2x2x1
jax: 0.10.0
libtpu: 0.0.40
codegen_flags: <defaults>
</compile_context>

<pallas_src>
import jax
import jax.numpy as jnp
from jax.experimental import pallas as pl
from jax.experimental.pallas import tpu as pltpu

# ---- small config consistent with the module's __init__ -------------------
EMBED_DIM = 32          # config.hidden_size
IMAGE_SIZE = 16         # config.image_size
PATCH_SIZE = 8          # config.patch_size
TEMPORAL_SIZE = 2       # additional_vision_config.temporal_size
ADD_CLS_NUM = 2         # additional_vision_config.add_cls_num
IF_USE_TEMPORAL_EMBED = True

GRID = IMAGE_SIZE // PATCH_SIZE
NUM_PATCHES = GRID * GRID              # P
NUM_POSITIONS = NUM_PATCHES + 1
M_CLS = 1 + ADD_CLS_NUM


# ---------------------------------------------------------------------------
# Pallas kernel
# ---------------------------------------------------------------------------
def _embed_kernel(x_ref, w_ref, bias_ref, out_ref):
    # x_ref:    (row_tile, K)   bf16   im2col patch rows (cls rows are zeros)
    # w_ref:    (K, D)          bf16   flattened conv weight
    # bias_ref: (row_tile, D)   f32    cls/added-cls/temporal/positional bias
    # out_ref:  (row_tile, D)
    pe = jnp.dot(x_ref[...], w_ref[...], preferred_element_type=jnp.float32)
    out_ref[...] = (pe + bias_ref[...]).astype(out_ref.dtype)


# ---------------------------------------------------------------------------
# Wrapper
# ---------------------------------------------------------------------------
def clipvip_embeddings(pixel_values, params, *, row_tile=1024,
                       out_dtype=jnp.float32):
    """Returns (embeds, (M, N, L)) like CLIPVisionViPEmbeddings.forward."""
    B, T, C, H, W = pixel_values.shape
    ps = PATCH_SIZE
    Gh, Gw = H // ps, W // ps
    P = Gh * Gw
    D = EMBED_DIM
    K = C * ps * ps
    L_out = M_CLS + T * P

    # --- im2col (layout plumbing, matches Conv2d stride=kernel, bias=False) --
    # Cast to bf16 first so the transpose copy moves half the bytes.
    x = pixel_values.astype(jnp.bfloat16)
    x = x.reshape(B * T, C, Gh, ps, Gw, ps).transpose(0, 2, 4, 1, 3, 5)
    patches = x.reshape(B, T * P, K)                            # (B, T*P, K)
    # Prepend M_CLS zero rows per batch (cls / added-cls slots): tiny and
    # fuses with the im2col copy; keeps every output tile a uniform store.
    x_rows = jnp.pad(patches, ((0, 0), (M_CLS, 0), (0, 0)))     # (B, L_out, K)

    # Conv weight (D, C, ps, ps) -> (K, D); (c, kh, kw) flatten order matches
    # the im2col above.
    w = params["patch_w"].reshape(D, K).T.astype(jnp.bfloat16)  # (K, D)

    # --- precomputed additive bias, ONE copy shared across batches -----------
    pos_w = params["pos_emb"].astype(jnp.float32)               # (P+1, D)
    cls_pos = pos_w[0:1]                                        # (1, D)
    pos = pos_w[1:]                                             # (P, D)
    if IF_USE_TEMPORAL_EMBED:
        temb = params["temporal"][0].astype(jnp.float32)        # (T, D)
    else:
        temb = jnp.zeros((T, D), jnp.float32)
    cls_rows = jnp.concatenate(
        [params["class_emb"].reshape(1, D).astype(jnp.float32) + cls_pos,
         params["added_cls"].astype(jnp.float32) + cls_pos], axis=0)  # (M_CLS, D)
    patch_rows = (temb[:, None, :] + pos[None, :, :]).reshape(T * P, D)
    bias = jnp.concatenate([cls_rows, patch_rows], axis=0)      # (L_out, D)

    # --- row tiling -----------------------------------------------------------
    if row_tile is None or row_tile >= L_out:
        row_tile = L_out                       # full dim (legal regardless of 8-align)
    else:
        row_tile = max(8, (row_tile // 8) * 8)  # sublane-aligned tile
    n_row_tiles = pl.cdiv(L_out, row_tile)

    # Explicit VMEM budget: double-buffered x/bias/out tiles + resident weight.
    # Capped at 64 MiB so the same sizing is safe on v7x; raise row_tile and
    # this cap together on 128-MiB-VMEM v5e/v6e if profiling asks for it.
    out_isz = jnp.dtype(out_dtype).itemsize
    vmem_needed = (2 * row_tile * K * 2 + 2 * K * D * 2
                   + 2 * row_tile * D * 4 + 2 * row_tile * D * out_isz)
    vmem_limit = int(min(max(2 * vmem_needed, 32 << 20), 64 << 20))

    embeds = pl.pallas_call(
        _embed_kernel,
        out_shape=jax.ShapeDtypeStruct((B, L_out, D), out_dtype),
        grid_spec=pltpu.PrefetchScalarGridSpec(
            num_scalar_prefetch=0,
            grid=(B, n_row_tiles),
            in_specs=[
                # per-batch activation tile (bf16)
                pl.BlockSpec((None, row_tile, K), lambda b, i: (b, i, 0)),
                # weight: fetched once, resident across steps
                pl.BlockSpec((K, D), lambda b, i: (0, 0)),
                # bias: shared across batches, never B-broadcast in HBM
                pl.BlockSpec((row_tile, D), lambda b, i: (i, 0)),
            ],
            out_specs=pl.BlockSpec((None, row_tile, D), lambda b, i: (b, i, 0)),
        ),
        compiler_params=pltpu.CompilerParams(
            dimension_semantics=("parallel", "parallel"),
            vmem_limit_bytes=vmem_limit),
    )(x_rows, w, bias)

    M, N, L = M_CLS, T, P
    return embeds, (M, N, L)


# ---------------------------------------------------------------------------
# Pure-JAX reference (f32 lax.conv) for correctness checking
# ---------------------------------------------------------------------------
def reference(pixel_values, params):
    B, T, C, H, W = pixel_values.shape
    x = pixel_values.reshape(-1, C, H, W)
    pe = jax.lax.conv_general_dilated(
        x, params["patch_w"],
        window_strides=(PATCH_SIZE, PATCH_SIZE), padding="VALID",
        dimension_numbers=("NCHW", "OIHW", "NCHW"))              # (B*T, D, Gh, Gw)
    pe = pe.reshape(B * T, EMBED_DIM, -1).transpose(0, 2, 1)     # (B*T, P, D)
    pe = pe.reshape(B, T, -1, EMBED_DIM)
    if IF_USE_TEMPORAL_EMBED:
        pe = pe + params["temporal"][:, :, None, :]
    cls_pos = params["pos_emb"][0:1][None]                       # (1, 1, D)
    pos = params["pos_emb"][1:][None]                            # (1, P, D)
    pe = pe + pos[:, None]
    class_embeds = jnp.broadcast_to(params["class_emb"], (B, 1, EMBED_DIM)) + cls_pos
    added = jnp.broadcast_to(params["added_cls"], (B, ADD_CLS_NUM, EMBED_DIM)) + cls_pos
    return jnp.concatenate(
        [class_embeds, added, pe.reshape(B, -1, EMBED_DIM)], axis=1)


# ---------------------------------------------------------------------------
if __name__ == "__main__":
    key = jax.random.PRNGKey(0)
    k1, k2, k3, k4, k5, kx = jax.random.split(key, 6)
    # Deterministic synthetic parameters (shapes from the module's __init__).
    # NOTE: temporal_embedding is randomized (module inits zeros) so the
    # temporal-add path is actually exercised numerically.
    params = {
        "added_cls": jax.random.normal(k1, (ADD_CLS_NUM, EMBED_DIM), jnp.float32),
        "class_emb": jax.random.normal(k2, (EMBED_DIM,), jnp.float32),
        "patch_w": 0.02 * jax.random.normal(
            k3, (EMBED_DIM, 3, PATCH_SIZE, PATCH_SIZE), jnp.float32),
        "pos_emb": 0.02 * jax.random.normal(
            k4, (NUM_POSITIONS, EMBED_DIM), jnp.float32),
        "temporal": 0.02 * jax.random.normal(
            k5, (1, TEMPORAL_SIZE, EMBED_DIM), jnp.float32),
    }

    B = 2
    pixel_values = jax.random.normal(
        kx, (B, TEMPORAL_SIZE, 3, IMAGE_SIZE, IMAGE_SIZE), jnp.float32)

    embeds, (M, N, L) = clipvip_embeddings(pixel_values, params)
    embeds = jax.block_until_ready(embeds)

    assert embeds.shape == (B, M + N * L, EMBED_DIM), embeds.shape
    assert (M, N, L) == (1 + ADD_CLS_NUM, TEMPORAL_SIZE, NUM_PATCHES)

    ref = reference(pixel_values, params)
    # Tolerance loosened vs. the f32 reference: matmul operands are bf16
    # (cls/bias rows stay exact; patch rows show bf16-level error only).
    assert jnp.allclose(embeds, ref, atol=3e-2, rtol=3e-2), (
        float(jnp.max(jnp.abs(embeds - ref))))

    print("KERNEL_OK")
</pallas_src>

<mosaic_0001>
module attributes {stable_mosaic.version = 11 : i64} {
  func.func @_embed_kernel(%arg0: i32, %arg1: i32, %arg2: memref<1x11x192xbf16, #tpu.memory_space<vmem>>, %arg3: memref<192x32xbf16, #tpu.memory_space<vmem>>, %arg4: memref<11x32xf32, #tpu.memory_space<vmem>>, %arg5: memref<1x11x32xf32, #tpu.memory_space<vmem>>) attributes {dimension_semantics = [#tpu.dimension_semantics<parallel>, #tpu.dimension_semantics<parallel>], iteration_bounds = array<i64: 2, 1>, scalar_prefetch = 0 : i64, scratch_operands = 0 : i64, tpu.core_type = #tpu.core_type<tc>, window_params = [{transform_indices = @transform_0, window_bounds = array<i64: 1, 11, 192>}, {pipeline_mode = #tpu.pipeline_mode<synchronous>, transform_indices = @transform_1, window_bounds = array<i64: 192, 32>}, {transform_indices = @transform_2, window_bounds = array<i64: 11, 32>}, {transform_indices = @transform_3, window_bounds = array<i64: 1, 11, 32>}]} {
    %c0 = arith.constant 0 : index
    %c0_0 = arith.constant 0 : index
    %c0_1 = arith.constant 0 : index
    %0 = vector.load %arg2[%c0, %c0_0, %c0_1] : memref<1x11x192xbf16, #tpu.memory_space<vmem>>, vector<1x11x192xbf16>
    %1 = vector.shape_cast %0 : vector<1x11x192xbf16> to vector<11x192xbf16>
    %c0_2 = arith.constant 0 : index
    %c0_3 = arith.constant 0 : index
    %2 = vector.load %arg3[%c0_2, %c0_3] : memref<192x32xbf16, #tpu.memory_space<vmem>>, vector<192x32xbf16>
    %cst = arith.constant dense<0.000000e+00> : vector<11x32xf32>
    %3 = tpu.matmul %1, %2, %cst {dimension_numbers = #tpu.dot_dimension_numbers<[1], [0], [0], [1], [0, 0, 1, 1], [], []>} : vector<11x192xbf16>, vector<192x32xbf16>, vector<11x32xf32> -> vector<11x32xf32>
    %c0_4 = arith.constant 0 : index
    %c0_5 = arith.constant 0 : index
    %4 = vector.load %arg4[%c0_4, %c0_5] : memref<11x32xf32, #tpu.memory_space<vmem>>, vector<11x32xf32>
    %5 = arith.addf %3, %4 : vector<11x32xf32>
    %c0_6 = arith.constant 0 : index
    %c0_7 = arith.constant 0 : index
    %c0_8 = arith.constant 0 : index
    %6 = vector.load %arg5[%c0_6, %c0_7, %c0_8] : memref<1x11x32xf32, #tpu.memory_space<vmem>>, vector<1x11x32xf32>
    %7 = vector.shape_cast %6 : vector<1x11x32xf32> to vector<11x32xf32>
    %8 = vector.shape_cast %5 : vector<11x32xf32> to vector<1x11x32xf32>
    tpu.vector_store %arg5[%c0_6, %c0_7, %c0_8], %8 {strides = array<i32>} : memref<1x11x32xf32, #tpu.memory_space<vmem>>, vector<1x11x32xf32>,
    return
  }
  func.func @transform_0(%arg0: i32, %arg1: i32) -> (i32, i32, i32) {
    %c0_i32 = arith.constant 0 : i32
    %c0_i32_0 = arith.constant 0 : i32
    return %arg0, %arg1, %c0_i32 : i32, i32, i32
  }
  func.func @transform_1(%arg0: i32, %arg1: i32) -> (i32, i32) {
    %c0_i32 = arith.constant 0 : i32
    %c0_i32_0 = arith.constant 0 : i32
    %c0_i32_1 = arith.constant 0 : i32
    return %c0_i32, %c0_i32_0 : i32, i32
  }
  func.func @transform_2(%arg0: i32, %arg1: i32) -> (i32, i32) {
    %c0_i32 = arith.constant 0 : i32
    %c0_i32_0 = arith.constant 0 : i32
    return %arg1, %c0_i32 : i32, i32
  }
  func.func @transform_3(%arg0: i32, %arg1: i32) -> (i32, i32, i32) {
    %c0_i32 = arith.constant 0 : i32
    %c0_i32_0 = arith.constant 0 : i32
    return %arg0, %arg1, %c0_i32 : i32, i32, i32
  }
}

</mosaic_0001>

<llo_original>
// kernel: tpu_custom_call.1
$region0: #{tpu_custom_call.1}
  #allocation0 [shape = 'u32[]', space=smem, size = 0x4, offset = 0x4, fixed_abs, tag = 'smem constant byte address 0x4 - core index']
  #allocation1 [shape = 'u32[144,128]{1,0:T(1,128)}', space=vmem, size = 0x12000, scoped, tag = 'internal scratch']
  %s0 = inlined_call_operand.vmem [shape: bf16[2,11,192], index: 0, kind: input, shape index: {}]
  %s1 = inlined_call_operand.vmem [shape: bf16[192,32], index: 1, kind: input, shape index: {}]
  %s2 = inlined_call_operand.vmem [shape: f32[11,32], index: 2, kind: input, shape index: {}]
  %s3 = inlined_call_operand.vmem [shape: f32[2,11,32], index: 3, kind: output, shape index: {}]
  %s4 = sld [smem:[#allocation0]]
  $region45: #{tpu_custom_call.1} parent=0
    _
  %s6 = ssub.s32 1, %s4
  %s7 = scalar_select 0, %s6, %s4
  loop: start=0, step=1, limit=4
  $region2: #{tpu_custom_call.1} parent=0 // loop_pre_header
    _
  $region3: #{tpu_custom_call.1} parent=0 // loop_header
    %s9 = sphi 0, %s13
    %p10 = scmp.ge.s32.totalorder %s9, 4
    %s16 = sphi 0, %s28
    %s17 = sphi 0, %s24
    %s18 = sphi 0, %s16
    %s19 = sphi 0, %s17
    %s20 = sphi 0, %s18
    %s21 = sphi 0, %s19
    %s33 = sphi 0, %s35
    %s36 = sphi 0, %s33
    %s37 = sphi 0, %s36
    %s53 = sphi 0, %s37
    %s57 = sphi 0, %s57
    %s59 = sphi 0, %s57
    %s60 = sphi 0, %s59
    %s74 = sphi 0, %s60
    %s80 = sphi 0, %s82
    %s83 = sphi 0, %s80
    %s84 = sphi 0, %s83
    %s100 = sphi 0, %s84
    %s108 = sphi 0, %s110
    %s111 = sphi 0, %s108
    %s112 = sphi 0, %s111
    %s128 = sphi 0, %s112
  $region4: #{tpu_custom_call.1} parent=0 // loop_header_branch
    %12 = sbr.rel (%p10) target = $region8
  $region5: #{tpu_custom_call.1} parent=0 // loop_body
    %s14 = ssub.s32 %s9, 1
    %s15 = ssub.s32 %s9, 2
    %s22 = sadd.s32 1, %s17
    %p23 = scmp.ge.s32.totalorder %s22, 1
    %s24 = scalar_select %p23, 0, %s22
    %s25 = sadd.s32 1, %s16
    %s26 = scalar_select %p23, %s25, %s16
    %p27 = scmp.ge.s32.totalorder %s26, 2
    %s28 = scalar_select %p27, 0, %s26
    %s29 = ssub.s32 %s16, %s28
    %s30 = ssub.s32 %s17, %s24
    %s31 = sor.u32 %s29, %s30
    %p32 = scmp.eq.s32.totalorder %s31, 0
    %s34 = sadd.s32 %s33, 1
    %s35 = scalar_select %p32, %s33, %s34
    %p38 = pneg %p32
    %p39 = scmp.eq.s32.totalorder %s9, 1
    %p40 = por %p38, %p39
    %p41 = scmp.ne.s32.totalorder %s33, %s36
    %p42 = scmp.eq.s32.totalorder %s9, 0
    %p43 = por %p41, %p42
    %p44 = scmp.ne.s32.totalorder %s33, %s36
    %p45 = scmp.eq.s32.totalorder %s14, 1
    %p46 = por %p44, %p45
    %p47 = scmp.ne.s32.totalorder %s36, %s37
    %p48 = scmp.eq.s32.totalorder %s14, 0
    %p49 = por %p47, %p48
    %p50 = scmp.ne.s32.totalorder %s36, %s37
    %p51 = scmp.eq.s32.totalorder %s15, 1
    %p52 = por %p50, %p51
    %p54 = scmp.ne.s32.totalorder %s37, %s53
    %p55 = scmp.eq.s32.totalorder %s15, 0
    %p56 = por %p54, %p55
    %s58 = sadd.s32 %s57, 1
    %p61 = scmp.eq.s32.totalorder %s9, 1
    %p62 = scmp.ne.s32.totalorder %s57, %s59
    %p63 = scmp.eq.s32.totalorder %s9, 0
    %p64 = por %p62, %p63
    %p65 = scmp.ne.s32.totalorder %s57, %s59
    %p66 = scmp.eq.s32.totalorder %s14, 1
    %p67 = por %p65, %p66
    %p68 = scmp.ne.s32.totalorder %s59, %s60
    %p69 = scmp.eq.s32.totalorder %s14, 0
    %p70 = por %p68, %p69
    %p71 = scmp.ne.s32.totalorder %s59, %s60
    %p72 = scmp.eq.s32.totalorder %s15, 1
    %p73 = por %p71, %p72
    %p75 = scmp.ne.s32.totalorder %s60, %s74
    %p76 = scmp.eq.s32.totalorder %s15, 0
    %p77 = por %p75, %p76
    %s78 = ssub.s32 %s17, %s24
    %p79 = scmp.eq.s32.totalorder %s78, 0
    %s81 = sadd.s32 %s80, 1
    %s82 = scalar_select %p79, %s80, %s81
    %p85 = pneg %p79
    %p86 = scmp.eq.s32.totalorder %s9, 1
    %p87 = por %p85, %p86
    %p88 = scmp.ne.s32.totalorder %s80, %s83
    %p89 = scmp.eq.s32.totalorder %s9, 0
    %p90 = por %p88, %p89
    %p91 = scmp.ne.s32.totalorder %s80, %s83
    %p92 = scmp.eq.s32.totalorder %s14, 1
    %p93 = por %p91, %p92
    %p94 = scmp.ne.s32.totalorder %s83, %s84
    %p95 = scmp.eq.s32.totalorder %s14, 0
    %p96 = por %p94, %p95
    %p97 = scmp.ne.s32.totalorder %s83, %s84
    %p98 = scmp.eq.s32.totalorder %s15, 1
    %p99 = por %p97, %p98
    %p101 = scmp.ne.s32.totalorder %s84, %s100
    %p102 = scmp.eq.s32.totalorder %s15, 0
    %p103 = por %p101, %p102
    %s104 = ssub.s32 %s16, %s28
    %s105 = ssub.s32 %s17, %s24
    %s106 = sor.u32 %s104, %s105
    %p107 = scmp.eq.s32.totalorder %s106, 0
    %s109 = sadd.s32 %s108, 1
    %s110 = scalar_select %p107, %s108, %s109
    %p113 = pneg %p107
    %p114 = scmp.eq.s32.totalorder %s9, 1
    %p115 = por %p113, %p114
    %p116 = scmp.ne.s32.totalorder %s108, %s111
    %p117 = scmp.eq.s32.totalorder %s9, 0
    %p118 = por %p116, %p117
    %p119 = scmp.ne.s32.totalorder %s108, %s111
    %p120 = scmp.eq.s32.totalorder %s14, 1
    %p121 = por %p119, %p120
    %p122 = scmp.ne.s32.totalorder %s111, %s112
    %p123 = scmp.eq.s32.totalorder %s14, 0
    %p124 = por %p122, %p123
    %p125 = scmp.ne.s32.totalorder %s111, %s112
    %p126 = scmp.eq.s32.totalorder %s15, 1
    %p127 = por %p125, %p126
    %p129 = scmp.ne.s32.totalorder %s112, %s128
    %p130 = scmp.eq.s32.totalorder %s15, 0
    %p131 = por %p129, %p130
    %p132 = scmp.le.s32.totalorder 1, %s9
    %p133 = scmp.lt.s32.totalorder %s9, 3
    %p134 = pnand %p132, %p133
    %p135 = pneg %p134
    // Predicated region
    $region9: #{tpu_custom_call.1} parent=5 // pred_check
      _
    $region10: #{tpu_custom_call.1} parent=5 // pred_check_branch
      %137 = sbr.rel (%p134) target = $region12
    $region11: #{tpu_custom_call.1} parent=5 // pred_region
      %s138 = ssub.s32 %s9, 1
      // Predicated region
      $region13: #{tpu_custom_call.1} parent=11 // pred_check
        %p139 = pneg %p70
      $region14: #{tpu_custom_call.1} parent=11 // pred_check_branch
        %141 = sbr.rel (%p139) target = $region16
      $region15: #{tpu_custom_call.1} parent=11 // pred_region
        _
      $region16: #{tpu_custom_call.1} parent=11 // pred_fallthru
        _
      // Predicated region
      $region17: #{tpu_custom_call.1} parent=11 // pred_check
        %p142 = pneg %p96
      $region18: #{tpu_custom_call.1} parent=11 // pred_check_branch
        %144 = sbr.rel (%p142) target = $region20
      $region19: #{tpu_custom_call.1} parent=11 // pred_region
        %s145 = smul.u32 2, %s19
        %p146 = scmp.lt.s32.totalorder %s145, 1
        %s147 = scalar_select %p146, %s145, 1
        %s148 = smul.addr %s147, 8
        %s149 = scalar_lea.vmem %s2, %s148
        %s150 = smul.u32 2, %s19
      $region20: #{tpu_custom_call.1} parent=11 // pred_fallthru
        _
    $region12: #{tpu_custom_call.1} parent=5 // pred_fallthru
      _
    %p151 = scmp.lt.s32.totalorder %s9, 2
    // Predicated region
    $region21: #{tpu_custom_call.1} parent=5 // pred_check
      %p152 = pneg %p151
    $region22: #{tpu_custom_call.1} parent=5 // pred_check_branch
      %154 = sbr.rel (%p152) target = $region24
    $region23: #{tpu_custom_call.1} parent=5 // pred_region
      // Predicated region
      $region25: #{tpu_custom_call.1} parent=23 // pred_check
        %p155 = pneg %p43
      $region26: #{tpu_custom_call.1} parent=23 // pred_check_branch
        %157 = sbr.rel (%p155) target = $region28
      $region27: #{tpu_custom_call.1} parent=23 // pred_region
        %s158 = smul.u32 2, %s17
        %p159 = scmp.lt.s32.totalorder %s16, 1
        %s160 = scalar_select %p159, %s16, 1
        %p161 = scmp.lt.s32.totalorder %s158, 1
        %s162 = scalar_select %p161, %s158, 1
        %s163 = smul.addr %s162, 2
        %s164 = smul.addr %s160, 4
        %s165 = sadd.s32 %s163, %s164
        %s166 = smul.addr %s165, 4
        %s167 = scalar_lea.vmem %s0, %s166
        %s168 = smul.u32 2, %s17
      $region28: #{tpu_custom_call.1} parent=23 // pred_fallthru
        _
    $region24: #{tpu_custom_call.1} parent=5 // pred_fallthru
      _
    %p169 = scmp.le.s32.totalorder 1, %s9
    %p170 = scmp.lt.s32.totalorder %s9, 3
    %p171 = pnand %p169, %p170
    %p172 = pneg %p171
    // Predicated region
    $region29: #{tpu_custom_call.1} parent=5 // pred_check
      _
    $region30: #{tpu_custom_call.1} parent=5 // pred_check_branch
      %174 = sbr.rel (%p171) target = $region32
    $region31: #{tpu_custom_call.1} parent=5 // pred_region
      %s175 = ssub.s32 %s9, 1
      %s176 = smul.u32 2, %s19
      %p177 = scmp.lt.s32.totalorder %s18, 1
      %s178 = scalar_select %p177, %s18, 1
      %p179 = scmp.lt.s32.totalorder %s176, 1
      %s180 = scalar_select %p179, %s176, 1
      %s181 = smul.addr %s180, 2
      %s182 = smul.addr %s178, 4
      %s183 = sadd.s32 %s181, %s182
      %s184 = smul.addr %s183, 4
      %s185 = scalar_lea.vmem %s0, %s184
      %p186 = pneg %p49
      %p187 = pneg %p46
      %p188 = pneg %p70
      %p189 = pneg %p67
      %s190 = smul.u32 2, %s19
      %p191 = scmp.lt.s32.totalorder %s190, 1
      %s192 = scalar_select %p191, %s190, 1
      %s193 = smul.addr %s192, 8
      %s194 = scalar_lea.vmem %s2, %s193
      %p195 = pneg %p96
      %p196 = pneg %p93
      %p197 = pneg %p124
      %p198 = pneg %p121
      %s199 = smul.u32 2, %s19
      %p200 = scmp.lt.s32.totalorder %s18, 1
      %s201 = scalar_select %p200, %s18, 1
      %p202 = scmp.lt.s32.totalorder %s199, 1
      %s203 = scalar_select %p202, %s199, 1
      %s204 = smul.addr %s201, 2
      %s205 = sadd.s32 %s203, %s204
      %s206 = smul.addr %s205, 8
      %s207 = scalar_lea.vmem %s3, %s206
      %s208 = smul.u32 2, %s19
      %p209 = scmp.lt.s32.totalorder %s18, 1
      %s210 = scalar_select %p209, %s18, 1
      %p211 = scmp.lt.s32.totalorder %s208, 1
      %s212 = scalar_select %p211, %s208, 1
      %s213 = smul.addr %s212, 2
      %s214 = smul.addr %s210, 4
      %s215 = sadd.s32 %s213, %s214
      %s216 = smul.addr %s215, 4
      %s217 = scalar_lea.vmem %s0, %s216
      %s218 = smul.u32 2, %s19
      %s219 = smul.u32 2, %s19
      %p220 = scmp.lt.s32.totalorder %s219, 1
      %s221 = scalar_select %p220, %s219, 1
      %s222 = smul.addr %s221, 8
      %s223 = scalar_lea.vmem %s2, %s222
      %s224 = smul.u32 2, %s19
      %s225 = smul.u32 2, %s19
      %p226 = scmp.lt.s32.totalorder %s18, 1
      %s227 = scalar_select %p226, %s18, 1
      %p228 = scmp.lt.s32.totalorder %s225, 1
      %s229 = scalar_select %p228, %s225, 1
      %s230 = smul.addr %s227, 2
      %s231 = sadd.s32 %s229, %s230
      %s232 = smul.addr %s231, 8
      %s233 = scalar_lea.vmem %s3, %s232
      %s234 = smul.u32 2, %s19
      %v236 = vld [vmem:[%s217] sm:$0xff]
      %v237 = vld [vmem:[%s217 + $0x8] sm:$0x33]
      %v238 = vld [vmem:[%s1] sm:$0xf]
      %v239 = vld [vmem:[%s1 + $0x4] sm:$0xf]
      %v240 = vld [vmem:[%s1 + $0x8] sm:$0xf]
      %v241 = vld [vmem:[%s1 + $0xc] sm:$0xf]
      %v242 = vld [vmem:[%s1 + $0x10] sm:$0xf]
      %v243 = vld [vmem:[%s1 + $0x14] sm:$0xf]
      %v244 = vld [vmem:[%s1 + $0x18] sm:$0xf]
      %v245 = vld [vmem:[%s1 + $0x1c] sm:$0xf]
      %v246 = vld [vmem:[%s1 + $0x20] sm:$0xf]
      %v247 = vld [vmem:[%s1 + $0x24] sm:$0xf]
      %v248 = vld [vmem:[%s1 + $0x28] sm:$0xf]
      %v249 = vld [vmem:[%s1 + $0x2c] sm:$0xf]
      %v250 = vld [vmem:[%s1 + $0x30] sm:$0xf]
      %v251 = vld [vmem:[%s1 + $0x34] sm:$0xf]
      %v252 = vld [vmem:[%s1 + $0x38] sm:$0xf]
      %v253 = vld [vmem:[%s1 + $0x3c] sm:$0xf]
      %v254 = vld [vmem:[%s1 + $0x40] sm:$0xf]
      %v255 = vld [vmem:[%s1 + $0x44] sm:$0xf]
      %v256 = vld [vmem:[%s1 + $0x48] sm:$0xf]
      %v257 = vld [vmem:[%s1 + $0x4c] sm:$0xf]
      %v258 = vld [vmem:[%s1 + $0x50] sm:$0xf]
      %v259 = vld [vmem:[%s1 + $0x54] sm:$0xf]
      %v260 = vld [vmem:[%s1 + $0x58] sm:$0xf]
      %v261 = vld [vmem:[%s1 + $0x5c] sm:$0xf]
      %v262 = vld [vmem:[%s223] sm:$0xff]
      %v263 = vld [vmem:[%s223 + $0x8] sm:$0x7]
      %v266 = vunpack.c.l.b16 %v236
      %v267 = vunpack.c.h.b16 %v236
      %v268 = vunpack.c.l.b16 %v237
      %v269 = vunpack.c.h.b16 %v237
      %v270 = vpack.c.b16 %v268, %v266
      %v271 = vpack.c.b16 %v269, %v267
      %v297 = vunpack.c.l.b16 %v238
      %v298 = vunpack.c.l.b16 %v239
      %v299 = vunpack.c.l.b16 %v240
      %v300 = vunpack.c.l.b16 %v241
      %v301 = vunpack.c.l.b16 %v242
      %v302 = vunpack.c.l.b16 %v243
      %v303 = vunpack.c.l.b16 %v244
      %v304 = vunpack.c.l.b16 %v245
      %v305 = vunpack.c.l.b16 %v246
      %v306 = vunpack.c.l.b16 %v247
      %v307 = vunpack.c.l.b16 %v248
      %v308 = vunpack.c.l.b16 %v249
      %v309 = vunpack.c.l.b16 %v250
      %v310 = vunpack.c.l.b16 %v251
      %v311 = vunpack.c.l.b16 %v252
      %v312 = vunpack.c.l.b16 %v253
      %v313 = vunpack.c.l.b16 %v254
      %v314 = vunpack.c.l.b16 %v255
      %v315 = vunpack.c.l.b16 %v256
      %v316 = vunpack.c.l.b16 %v257
      %v317 = vunpack.c.l.b16 %v258
      %v318 = vunpack.c.l.b16 %v259
      %v319 = vunpack.c.l.b16 %v260
      %v320 = vunpack.c.l.b16 %v261
      %v321 = vpack.c.b16 %v298, %v297
      %v322 = vpack.c.b16 %v300, %v299
      %v323 = vpack.c.b16 %v302, %v301
      %v324 = vpack.c.b16 %v304, %v303
      %v325 = vpack.c.b16 %v306, %v305
      %v326 = vpack.c.b16 %v308, %v307
      %v327 = vpack.c.b16 %v310, %v309
      %v328 = vpack.c.b16 %v312, %v311
      %v329 = vpack.c.b16 %v314, %v313
      %v330 = vpack.c.b16 %v316, %v315
      %v331 = vpack.c.b16 %v318, %v317
      %v332 = vpack.c.b16 %v320, %v319
      %vm345 = vcmask 523264
      %v347 = vsel %vm345, %v271, 0
      %349 = vmatprep.subr.bf16.mxu0 0
      %350 = vmatpush1.bf16.msra.mxu0 %v321
      %351 = vmatprep.subr.bf16.mxu0 0
      %352 = vmatpush1.bf16.msra.mxu0 %v322
      %353 = vmatprep.subr.bf16.mxu0 0
      %354 = vmatpush1.bf16.msra.mxu0 %v323
      %355 = vmatprep.subr.bf16.mxu0 0
      %356 = vmatpush1.bf16.msra.mxu0 %v324
      %357 = vmatprep.subr.bf16.mxu0 0
      %358 = vmatpush1.bf16.msra.mxu0 %v325
      %359 = vmatprep.subr.bf16.mxu0 0
      %360 = vmatpush1.bf16.msra.mxu0 %v326
      %361 = vmatprep.subr.bf16.mxu0 0
      %362 = vmatpush1.bf16.msra.mxu0 %v327
      %363 = vmatprep.subr.bf16.mxu0 0
      %364 = vmatpush1.bf16.msra.mxu0 %v328
      %365 = vmatprep.subr.bf16.mxu0 0
      %366 = vmatpush1.bf16.msra.mxu0 %v329
      %367 = vmatprep.subr.bf16.mxu0 0
      %368 = vmatpush1.bf16.msra.mxu0 %v330
      %369 = vmatprep.subr.bf16.mxu0 0
      %370 = vmatpush1.bf16.msra.mxu0 %v331
      %371 = vmatprep.subr.bf16.mxu0 0
      %372 = vmatpush1.bf16.msra.mxu0 %v332
      %373 = vmatprep.subr.bf16.mxu0 0
      %374 = vmatpush1.bf16.msra.mxu0 0
      %375 = vmatprep.subr.bf16.mxu0 0
      %376 = vmatpush1.bf16.msra.mxu0 0
      %377 = vmatprep.subr.bf16.mxu0 0
      %378 = vmatpush1.bf16.msra.mxu0 0
      %379 = vmatprep.subr.bf16.mxu0 0
      %380 = vmatpush1.bf16.msra.mxu0 0
      %381 = vmatprep.mubr.bf16.mxu0 %v347
      %382 = vmatmul.mubr.bf16.gmra.mrb[0].mxu0 %v270
      %v383 = vpop.f32.mrb[0].mxu0
      %v384 = vadd.f32 %v262, %v383
      %v385 = vpop.f32.mrb[0].mxu0
      %v386 = vpop.f32.mrb[0].mxu0
      %v387 = vadd.f32 %v263, %v386
      %v388 = vpop.f32.mrb[0].mxu0
      %389 = vdwg.mxu0
      %vm390 = vcmask 261120
      %391 = vst.msk [vmem:[%s233] sm:$0xff] %vm390, %v384
      %vm392 = vcmask 256000
      %393 = vst.msk [vmem:[%s233 + $0x8] sm:$0x7] %vm392, %v387
      %s394 = smul.u32 2, %s19
      %p395 = scmp.lt.s32.totalorder %s18, 1
      %s396 = scalar_select %p395, %s18, 1
      %p397 = scmp.lt.s32.totalorder %s394, 1
      %s398 = scalar_select %p397, %s394, 1
      %s399 = smul.addr %s396, 2
      %s400 = sadd.s32 %s398, %s399
      %s401 = smul.addr %s400, 8
      %s402 = scalar_lea.vmem %s3, %s401
      // Predicated region
      $region33: #{tpu_custom_call.1} parent=31 // pred_check
        %p403 = pneg %p121
      $region34: #{tpu_custom_call.1} parent=31 // pred_check_branch
        %405 = sbr.rel (%p403) target = $region36
      $region35: #{tpu_custom_call.1} parent=31 // pred_region
        %s406 = smul.u32 2, %s19
      $region36: #{tpu_custom_call.1} parent=31 // pred_fallthru
        _
    $region32: #{tpu_custom_call.1} parent=5 // pred_fallthru
      _
    %p407 = scmp.le.s32.totalorder 2, %s9
    // Predicated region
    $region37: #{tpu_custom_call.1} parent=5 // pred_check
      %p408 = pneg %p407
    $region38: #{tpu_custom_call.1} parent=5 // pred_check_branch
      %410 = sbr.rel (%p408) target = $region40
    $region39: #{tpu_custom_call.1} parent=5 // pred_region
      %s411 = ssub.s32 %s9, 2
      // Predicated region
      $region41: #{tpu_custom_call.1} parent=39 // pred_check
        %p412 = pneg %p127
      $region42: #{tpu_custom_call.1} parent=39 // pred_check_branch
        %414 = sbr.rel (%p412) target = $region44
      $region43: #{tpu_custom_call.1} parent=39 // pred_region
        %s415 = smul.u32 2, %s21
        %p416 = scmp.lt.s32.totalorder %s20, 1
        %s417 = scalar_select %p416, %s20, 1
        %p418 = scmp.lt.s32.totalorder %s415, 1
        %s419 = scalar_select %p418, %s415, 1
        %s420 = smul.addr %s417, 2
        %s421 = sadd.s32 %s419, %s420
        %s422 = smul.addr %s421, 8
        %s423 = scalar_lea.vmem %s3, %s422
      $region44: #{tpu_custom_call.1} parent=39 // pred_fallthru
        _
    $region40: #{tpu_custom_call.1} parent=5 // pred_fallthru
      _
  $region6: #{tpu_custom_call.1} parent=0 // loop_footer
    %s13 = sadd.s32 1, %s9
  $region7: #{tpu_custom_call.1} parent=0 // loop_footer_branch
    %8 = sbr.rel target = $region3
  $region8: #{tpu_custom_call.1} parent=0 // loop_exit
    _

</llo_original>
